<compile_context>
chip_gen: v5e
topology: v5e:2x2
jax: 0.10.0
libtpu: 0.0.40
codegen_flags: <defaults>
</compile_context>

<pallas_src>
import functools

import jax
import jax.numpy as jnp
from jax import lax
from jax.experimental import pallas as pl
from jax.experimental.pallas import tpu as pltpu


def _make_intrin_kernel(H, W, order):
    """Builds a kernel closure with H / W / order folded in as Python scalars."""
    half_w = float(W) / 2.0
    half_h = float(H) / 2.0
    w_f = float(W)

    def kernel(fx_ref, out_ref):
        # fx_ref: SMEM (1,) f32 ; out_ref: VMEM (4, 4) f32
        fx = fx_ref[0]
        if order == 2:                      # static Python branch
            f = fx * fx * w_f
        else:
            f = fx * w_f

        # Build the template in-kernel (no captured array constants):
        # index planes -> boolean masks -> one select chain on a single vreg.
        row = lax.broadcasted_iota(jnp.int32, (4, 4), 0)
        col = lax.broadcasted_iota(jnp.int32, (4, 4), 1)
        is_focal = (row == col) & (row < 2)          # (0,0), (1,1) -> f
        is_unit = (row == col) & (row >= 2)          # (2,2), (3,3) -> 1
        base = jnp.where(
            is_unit, 1.0,
            jnp.where((row == 0) & (col == 2), half_w,
                      jnp.where((row == 1) & (col == 2), half_h, 0.0)))
        out_ref[...] = jnp.where(is_focal, f, base).astype(jnp.float32)

    return kernel


def _intrin_pallas(fx, H, W, order):
    fx_arr = jnp.asarray(fx, dtype=jnp.float32).reshape((1,))
    return pl.pallas_call(
        _make_intrin_kernel(H, W, order),
        out_shape=jax.ShapeDtypeStruct((4, 4), jnp.float32),
        in_specs=[pl.BlockSpec(memory_space=pltpu.MemorySpace.SMEM)],
        out_specs=pl.BlockSpec(memory_space=pltpu.MemorySpace.VMEM),
        # Tiny op: tell XLA it is negligible so it can overlap/reorder freely.
        cost_estimate=pl.CostEstimate(flops=16, transcendentals=0,
                                      bytes_accessed=68),
    )(fx_arr)


@functools.partial(jax.custom_vjp, nondiff_argnums=(1, 2, 3))
def learn_intrin_forward(fx, H, W, order=2):
    """Pallas equivalent of LearnIntrin.forward(); returns (4, 4) f32 matrix."""
    assert order in (1, 2)
    return _intrin_pallas(fx, H, W, order)


def _intrin_fwd(fx, H, W, order):
    return _intrin_pallas(fx, H, W, order), jnp.asarray(fx)


def _intrin_bwd(H, W, order, fx, g):
    # Only (0,0) and (1,1) depend on fx:  d f / d fx = order * fx**(order-1) * W
    fx_f32 = fx.astype(jnp.float32)
    if order == 2:
        df_dfx = 2.0 * fx_f32 * float(W)
    else:
        df_dfx = jnp.float32(float(W))
    grad_fx = ((g[0, 0] + g[1, 1]) * df_dfx).astype(fx.dtype)
    return (grad_fx,)


learn_intrin_forward.defvjp(_intrin_fwd, _intrin_bwd)


if __name__ == "__main__":
    # Small config consistent with the module; fx is the learned scalar
    # parameter, drawn deterministically from PRNGKey(0) (synthetic param).
    H, W, order = 16, 16, 2
    key = jax.random.PRNGKey(0)
    fx = jax.random.uniform(key, (), dtype=jnp.float32, minval=0.5, maxval=1.5)

    intrinsic = learn_intrin_forward(fx, H, W, order)
    intrinsic = jax.block_until_ready(intrinsic)

    # Reference check in plain JAX (same semantics as the PyTorch forward).
    f = (fx * fx) * W if order == 2 else fx * W
    ref = jnp.array(
        [[f, 0.0, W / 2.0, 0.0],
         [0.0, f, H / 2.0, 0.0],
         [0.0, 0.0, 1.0, 0.0],
         [0.0, 0.0, 0.0, 1.0]],
        dtype=jnp.float32,
    )
    assert intrinsic.shape == (4, 4) and intrinsic.dtype == jnp.float32
    assert jnp.allclose(intrinsic, ref, atol=1e-6)

    # Gradient sanity check for the trainable focal coefficient (custom_vjp).
    grad_fx = jax.grad(lambda p: jnp.sum(learn_intrin_forward(p, H, W, order)))(fx)
    expected_grad = 2.0 * (2.0 * fx * W) if order == 2 else 2.0 * W
    assert jnp.allclose(grad_fx, expected_grad, rtol=1e-5)

    print("KERNEL_OK")
</pallas_src>

<mosaic_0001>
module attributes {stable_mosaic.version = 11 : i64} {
  func.func @kernel(%arg0: memref<1xf32, #tpu.memory_space<smem>>, %arg1: memref<4x4xf32, #tpu.memory_space<vmem>>) attributes {dimension_semantics = [], scalar_prefetch = 0 : i64, scratch_operands = 0 : i64, tpu.core_type = #tpu.core_type<tc>} {
    %c0 = arith.constant 0 : index
    %0 = memref.load %arg0[%c0] : memref<1xf32, #tpu.memory_space<smem>>
    %1 = arith.mulf %0, %0 : f32
    %cst = arith.constant 1.600000e+01 : f32
    %2 = arith.mulf %1, %cst : f32
    %3 = tpu.iota {dimensions = array<i32: 0>} : vector<4x4xi32>
    %4 = tpu.iota {dimensions = array<i32: 1>} : vector<4x4xi32>
    %5 = arith.cmpi eq, %3, %4 : vector<4x4xi32>
    %c2_i32 = arith.constant 2 : i32
    %6 = vector.broadcast %c2_i32 : i32 to vector<4x4xi32>
    %7 = arith.cmpi slt, %3, %6 : vector<4x4xi32>
    %8 = arith.andi %5, %7 : vector<4x4xi1>
    %9 = arith.cmpi eq, %3, %4 : vector<4x4xi32>
    %c2_i32_0 = arith.constant 2 : i32
    %10 = vector.broadcast %c2_i32_0 : i32 to vector<4x4xi32>
    %11 = arith.cmpi sge, %3, %10 : vector<4x4xi32>
    %12 = arith.andi %9, %11 : vector<4x4xi1>
    %c0_i32 = arith.constant 0 : i32
    %13 = vector.broadcast %c0_i32 : i32 to vector<4x4xi32>
    %14 = arith.cmpi eq, %3, %13 : vector<4x4xi32>
    %c2_i32_1 = arith.constant 2 : i32
    %15 = vector.broadcast %c2_i32_1 : i32 to vector<4x4xi32>
    %16 = arith.cmpi eq, %4, %15 : vector<4x4xi32>
    %17 = arith.andi %14, %16 : vector<4x4xi1>
    %c1_i32 = arith.constant 1 : i32
    %18 = vector.broadcast %c1_i32 : i32 to vector<4x4xi32>
    %19 = arith.cmpi eq, %3, %18 : vector<4x4xi32>
    %c2_i32_2 = arith.constant 2 : i32
    %20 = vector.broadcast %c2_i32_2 : i32 to vector<4x4xi32>
    %21 = arith.cmpi eq, %4, %20 : vector<4x4xi32>
    %22 = arith.andi %19, %21 : vector<4x4xi1>
    %cst_3 = arith.constant 8.000000e+00 : f32
    %cst_4 = arith.constant 0.000000e+00 : f32
    %23 = vector.broadcast %cst_3 : f32 to vector<4x4xf32>
    %24 = vector.broadcast %cst_4 : f32 to vector<4x4xf32>
    %25 = arith.select %22, %23, %24 : vector<4x4xi1>, vector<4x4xf32>
    %cst_5 = arith.constant 8.000000e+00 : f32
    %26 = vector.broadcast %cst_5 : f32 to vector<4x4xf32>
    %27 = arith.select %17, %26, %25 : vector<4x4xi1>, vector<4x4xf32>
    %cst_6 = arith.constant 1.000000e+00 : f32
    %28 = vector.broadcast %cst_6 : f32 to vector<4x4xf32>
    %29 = arith.select %12, %28, %27 : vector<4x4xi1>, vector<4x4xf32>
    %30 = vector.broadcast %2 : f32 to vector<4x4xf32>
    %31 = arith.select %8, %30, %29 : vector<4x4xi1>, vector<4x4xf32>
    %c0_7 = arith.constant 0 : index
    %c0_8 = arith.constant 0 : index
    %32 = vector.load %arg1[%c0_7, %c0_8] : memref<4x4xf32, #tpu.memory_space<vmem>>, vector<4x4xf32>
    tpu.vector_store %arg1[%c0_7, %c0_8], %31 {strides = array<i32>} : memref<4x4xf32, #tpu.memory_space<vmem>>, vector<4x4xf32>,
    return
  }
}

</mosaic_0001>

<llo_original>
// kernel: tpu_custom_call.1
$region0: #{tpu_custom_call.1}
  #allocation0 [shape = 'u32[]', space=smem, size = 0x4, offset = 0x4, fixed_abs, tag = 'smem constant byte address 0x4 - core index']
  #allocation1 [shape = 'u32[72,128]{1,0:T(1,128)}', space=vmem, size = 0x9000, scoped, tag = 'internal scratch']
  #allocation2 [shape = 'f32[1]{0:T(128)S(6)}', space=smem, size = 0x200, scoped, tag = 'scoped memory for tpu_custom_call.1']
  %s0 = inlined_call_operand.<no memory space> [shape: f32[1], index: 0, kind: input, shape index: {}]
  %s1 = inlined_call_operand.hbm [shape: f32[4,4], index: 1, kind: output, shape index: {}]
  %s2 = sld [smem:[#allocation0]]
  $region14: #{tpu_custom_call.1} parent=0
    _
  %s4 = ssub.s32 1, %s2
  %s5 = scalar_select 0, %s4, %s2
  %6 = sst [smem:[#allocation2]] %s0
  $region1: #{tpu_custom_call.1} parent=0
    #allocation3 [shape = 'u8[2048]{0}', space=vmem, size = 0x800, scoped, tag = 'output window, operand 0, single buffered']
    #allocation4 [shape = 's32[1]{0}', space=sflag, size = 0x4, scoped, tag = 'scoped memory for tpu_custom_call.1']
    %7 = vsyncpa [#allocation4], 0
    // Predicated region
    $region2: #{tpu_custom_call.1} parent=1 // pred_check
      _
    $region3: #{tpu_custom_call.1} parent=1 // pred_check_branch
      %9 = sbr.rel (0) target = $region5
    $region4: #{tpu_custom_call.1} parent=1 // pred_region
      _
    $region5: #{tpu_custom_call.1} parent=1 // pred_fallthru
      _
    %s10 = sld [smem:[#allocation2]]
    %s11 = smul.f32 %s10, %s10
    %s12 = smul.f32 %s11, 16.0
    %v13 = vlaneseq
    %v14 = vshrl.u32 %v13, 7
    %v15 = vlaneseq
    %v16 = vand.u32 %v15, 127
    %vm17 = vcmp.eq.s32.totalorder %v14, %v16
    %vm18 = vcmp.lt.s32.totalorder %v14, 2
    %vm19 = vmand %vm17, %vm18
    %vm20 = vcmp.ge.s32.totalorder %v14, 2
    %vm21 = vmand %vm17, %vm20
    %vm22 = vcmp.eq.s32.totalorder %v14, 0
    %vm23 = vcmp.eq.s32.totalorder %v16, 2
    %vm24 = vmand %vm22, %vm23
    %vm25 = vcmp.eq.s32.totalorder %v14, 1
    %vm26 = vmand %vm25, %vm23
    %v27 = vsel %vm26, 8.0, 0.0
    %v28 = vsel %vm24, 8.0, %v27
    %v29 = vsel %vm21, 1.0, %v28
    %v30 = vstv %s12
    %v31 = vsel %vm19, %v30, %v29
    %vm32 = vcmask 27648
    %33 = vst.msk [vmem:[#allocation3] sm:$0xf] %vm32, %v31
    // Predicated region
    $region6: #{tpu_custom_call.1} parent=1 // pred_check
      _
    $region7: #{tpu_custom_call.1} parent=1 // pred_check_branch
      %35 = sbr.rel (0) target = $region9
    $region8: #{tpu_custom_call.1} parent=1 // pred_region
      %37 = vsyncadd [#allocation4], 0
      %s39 = sshll.u32 [#allocation3], 4
      %s40 = int_to_ptr.vmem [resolvable:$true] %s39
      %s41 = sshll.u32 %s1, 4
      %s42 = int_to_ptr.hbm [resolvable:$true] %s41
      %44 = dma.vmem_to_hbm [thread:$0]  %s40, 64, %s42, [#allocation4]
    $region9: #{tpu_custom_call.1} parent=1 // pred_fallthru
      _
    // Predicated region
    $region10: #{tpu_custom_call.1} parent=1 // pred_check
      _
    $region11: #{tpu_custom_call.1} parent=1 // pred_check_branch
      %46 = sbr.rel (0) target = $region13
    $region12: #{tpu_custom_call.1} parent=1 // pred_region
      %48 = dma.done [#allocation4], 64
    $region13: #{tpu_custom_call.1} parent=1 // pred_fallthru
      _
    %49 = vsyncpa [#allocation4], 1

</llo_original>
